<compile_context>
chip_gen: v7x
topology: tpu7x:2x2x1
jax: 0.10.0
libtpu: 0.0.40
codegen_flags: <defaults>
</compile_context>

<pallas_src>
import jax
import jax.numpy as jnp
from jax.experimental import pallas as pl
from jax.experimental.pallas import tpu as pltpu


def _pos_embed_kernel(w_ref, o_ref):
    # w_ref: (tile_s, d_model) W_pos tile (VMEM-resident across the batch loop).
    # o_ref: (tile_s, d_model) view of out[b, si*tile_s:(si+1)*tile_s, :]
    #        (batch dim squeezed by the out BlockSpec).
    o_ref[...] = w_ref[...]


def _pick_seq_tile(seq, d_model, itemsize, block_budget_bytes=2 << 20):
    """Largest seq tile that (a) is a multiple of 8, (b) divides seq, and
    (c) keeps a single (tile_s, d_model) block under ~2 MiB so that the
    double-buffered in+out blocks stay well inside v7x's 64 MiB VMEM."""
    max_rows = max(8, ((block_budget_bytes // (d_model * itemsize)) // 8) * 8)
    if seq <= max_rows:
        return seq
    best = None
    t = 8
    while t <= max_rows:
        if seq % t == 0:
            best = t
        t += 8
    return best if best is not None else seq  # fallback: one full-seq block


def pos_embed(tokens: jax.Array, w_pos: jax.Array) -> jax.Array:
    """Equivalent of PosEmbed.forward(tokens) given W_pos.

    tokens: (batch, seq) int array — only its *shape* is used (as in PyTorch).
    w_pos:  (n_ctx, d_model) learned positional embedding table.
    returns (batch, seq, d_model) in w_pos.dtype.
    """
    batch, seq = tokens.shape
    n_ctx, d_model = w_pos.shape
    assert seq <= n_ctx, f"seq ({seq}) must be <= n_ctx ({n_ctx})"
    itemsize = jnp.dtype(w_pos.dtype).itemsize

    if seq % 8 == 0 and d_model % 128 == 0:
        w_arr = w_pos                                    # slice handled by index_map
        tile_s = _pick_seq_tile(seq, d_model, itemsize)
    else:
        # Ragged shape: use a single full (seq, d_model) block (block dims equal
        # to the array dims satisfy the (8, 128) rule); slice W once in the wrapper.
        w_arr = w_pos[:seq, :]
        tile_s = seq

    n_seq_tiles = seq // tile_s
    block_bytes = tile_s * d_model * itemsize
    # 2x in + 2x out double-buffered blocks, plus headroom; clamp to a value
    # that is valid on every generation (v7x has 64 MiB/TC physical VMEM).
    vmem_limit = int(min(max(8 * block_bytes, 8 << 20), 32 << 20))

    return pl.pallas_call(
        _pos_embed_kernel,
        out_shape=jax.ShapeDtypeStruct((batch, seq, d_model), w_pos.dtype),
        grid=(n_seq_tiles, batch),
        in_specs=[
            # Depends only on the seq-tile index -> stays VMEM-resident across
            # the inner batch loop (fetched ~once per seq tile).
            pl.BlockSpec((tile_s, d_model), lambda si, b: (si, 0)),
        ],
        out_specs=pl.BlockSpec(
            (None, tile_s, d_model),            # batch dim squeezed (size-1 block)
            lambda si, b: (b, si, 0),
        ),
        compiler_params=pltpu.CompilerParams(
            dimension_semantics=("arbitrary", "parallel"),  # batch split across TCs on v7x
            vmem_limit_bytes=vmem_limit,
        ),
    )(w_arr)


if __name__ == "__main__":
    # Small, shape-consistent config; d_model kept lane-aligned (multiple of 128).
    n_ctx, d_model = 16, 128
    batch, seq = 2, 8
    init_range = 0.02

    key = jax.random.PRNGKey(0)
    k_w, k_tok = jax.random.split(key)

    # Deterministic parameter init, matching nn.init.normal_(std=init_range).
    W_pos = (init_range * jax.random.normal(k_w, (n_ctx, d_model))).astype(jnp.float32)

    # Token ids (values irrelevant to PosEmbed — only the shape matters).
    tokens = jax.random.randint(k_tok, (batch, seq), 0, 50257, dtype=jnp.int32)

    out = jax.block_until_ready(pos_embed(tokens, W_pos))

    # Reference: W_pos[:seq] broadcast over batch.
    ref = jnp.broadcast_to(W_pos[:seq, :][None, :, :], (batch, seq, d_model))
    assert out.shape == (batch, seq, d_model)
    assert jnp.allclose(out, ref), "mismatch vs reference"

    print("KERNEL_OK")
</pallas_src>

<mosaic_0001>
module attributes {stable_mosaic.version = 11 : i64} {
  func.func @_pos_embed_kernel(%arg0: i32, %arg1: i32, %arg2: memref<8x128xf32, #tpu.memory_space<vmem>>, %arg3: memref<1x8x128xf32, #tpu.memory_space<vmem>>) attributes {dimension_semantics = [#tpu.dimension_semantics<arbitrary>, #tpu.dimension_semantics<parallel>], iteration_bounds = array<i64: 1, 2>, scalar_prefetch = 0 : i64, scratch_operands = 0 : i64, tpu.core_type = #tpu.core_type<tc>, window_params = [{transform_indices = @transform_0, window_bounds = array<i64: 8, 128>}, {transform_indices = @transform_1, window_bounds = array<i64: 1, 8, 128>}]} {
    %c0 = arith.constant 0 : index
    %c0_0 = arith.constant 0 : index
    %0 = vector.load %arg2[%c0, %c0_0] : memref<8x128xf32, #tpu.memory_space<vmem>>, vector<8x128xf32>
    %c0_1 = arith.constant 0 : index
    %c0_2 = arith.constant 0 : index
    %c0_3 = arith.constant 0 : index
    %1 = vector.load %arg3[%c0_1, %c0_2, %c0_3] : memref<1x8x128xf32, #tpu.memory_space<vmem>>, vector<1x8x128xf32>
    %2 = vector.shape_cast %1 : vector<1x8x128xf32> to vector<8x128xf32>
    %3 = vector.shape_cast %0 : vector<8x128xf32> to vector<1x8x128xf32>
    tpu.vector_store %arg3[%c0_1, %c0_2, %c0_3], %3 {strides = array<i32>} : memref<1x8x128xf32, #tpu.memory_space<vmem>>, vector<1x8x128xf32>,
    return
  }
  func.func @transform_0(%arg0: i32, %arg1: i32) -> (i32, i32) {
    %c0_i32 = arith.constant 0 : i32
    %c0_i32_0 = arith.constant 0 : i32
    return %arg0, %c0_i32 : i32, i32
  }
  func.func @transform_1(%arg0: i32, %arg1: i32) -> (i32, i32, i32) {
    %c0_i32 = arith.constant 0 : i32
    %c0_i32_0 = arith.constant 0 : i32
    return %arg1, %arg0, %c0_i32 : i32, i32, i32
  }
}

</mosaic_0001>

<llo_original>
// kernel: tpu_custom_call.1
$region0: #{tpu_custom_call.1}
  #allocation0 [shape = 'u32[]', space=smem, size = 0x4, offset = 0x4, fixed_abs, tag = 'smem constant byte address 0x4 - core index']
  #allocation1 [shape = 'u32[144,128]{1,0:T(1,128)}', space=vmem, size = 0x12000, scoped, tag = 'internal scratch']
  %s0 = inlined_call_operand.hbm [shape: f32[16,128], index: 0, kind: input, shape index: {}]
  %s1 = inlined_call_operand.hbm [shape: f32[2,8,128], index: 1, kind: output, shape index: {}]
  %s2 = sld [smem:[#allocation0]]
  $region41: #{tpu_custom_call.1} parent=0
    _
  %s4 = ssub.s32 1, %s2
  %s5 = scalar_select 0, %s4, %s2
  $region1: #{tpu_custom_call.1} parent=0
    #allocation2 [shape = 'u8[4096]{0}', space=vmem, size = 0x1000, scoped, tag = 'input window, operand 0, single buffered']
    #allocation3 [shape = 's32[2]{0}', space=sflag, size = 0x8, scoped, tag = 'scoped memory for tpu_custom_call.1']
    #allocation4 [shape = 's32[2]{0}', space=sflag, size = 0x8, scoped, tag = 'scoped memory for tpu_custom_call.1']
    #allocation5 [shape = 'u8[8192]{0}', space=vmem, size = 0x2000, scoped, tag = 'output window, operand 0']
    %6 = vsyncpa [#allocation3], 0
    %7 = vsyncpa [#allocation4], 0
    %s8 = scalar_lea.sflag [#allocation4], 1
    %9 = vsyncpa %s8, 0
    loop: start=0, step=1, limit=4
    $region2: #{tpu_custom_call.1} parent=1 // loop_pre_header
      _
    $region3: #{tpu_custom_call.1} parent=1 // loop_header
      %s11 = sphi 0, %s15
      %p12 = scmp.ge.s32.totalorder %s11, 4
      %s18 = sphi 0, %s30
      %s19 = sphi 0, %s26
      %s20 = sphi 0, %s18
      %s21 = sphi 0, %s19
      %s22 = sphi 0, %s20
      %s23 = sphi 0, %s21
      %s33 = sphi 0, %s35
      %s36 = sphi 0, %s33
      %s37 = sphi 0, %s36
      %s53 = sphi 0, %s37
      %s61 = sphi 0, %s63
      %s64 = sphi 0, %s61
      %s65 = sphi 0, %s64
      %s81 = sphi 0, %s65
    $region4: #{tpu_custom_call.1} parent=1 // loop_header_branch
      %14 = sbr.rel (%p12) target = $region8
    $region5: #{tpu_custom_call.1} parent=1 // loop_body
      %s16 = ssub.s32 %s11, 1
      %s17 = ssub.s32 %s11, 2
      %s24 = sadd.s32 1, %s19
      %p25 = scmp.ge.s32.totalorder %s24, 2
      %s26 = scalar_select %p25, 0, %s24
      %s27 = sadd.s32 1, %s18
      %s28 = scalar_select %p25, %s27, %s18
      %p29 = scmp.ge.s32.totalorder %s28, 1
      %s30 = scalar_select %p29, 0, %s28
      %s31 = ssub.s32 %s18, %s30
      %p32 = scmp.eq.s32.totalorder %s31, 0
      %s34 = sadd.s32 %s33, 1
      %s35 = scalar_select %p32, %s33, %s34
      %p38 = pneg %p32
      %p39 = scmp.eq.s32.totalorder %s11, 1
      %p40 = por %p38, %p39
      %p41 = scmp.ne.s32.totalorder %s33, %s36
      %p42 = scmp.eq.s32.totalorder %s11, 0
      %p43 = por %p41, %p42
      %p44 = scmp.ne.s32.totalorder %s33, %s36
      %p45 = scmp.eq.s32.totalorder %s16, 1
      %p46 = por %p44, %p45
      %p47 = scmp.ne.s32.totalorder %s36, %s37
      %p48 = scmp.eq.s32.totalorder %s16, 0
      %p49 = por %p47, %p48
      %p50 = scmp.ne.s32.totalorder %s36, %s37
      %p51 = scmp.eq.s32.totalorder %s17, 1
      %p52 = por %p50, %p51
      %p54 = scmp.ne.s32.totalorder %s37, %s53
      %p55 = scmp.eq.s32.totalorder %s17, 0
      %p56 = por %p54, %p55
      %s57 = ssub.s32 %s19, %s26
      %s58 = ssub.s32 %s18, %s30
      %s59 = sor.u32 %s57, %s58
      %p60 = scmp.eq.s32.totalorder %s59, 0
      %s62 = sadd.s32 %s61, 1
      %s63 = scalar_select %p60, %s61, %s62
      %p66 = pneg %p60
      %p67 = scmp.eq.s32.totalorder %s11, 1
      %p68 = por %p66, %p67
      %p69 = scmp.ne.s32.totalorder %s61, %s64
      %p70 = scmp.eq.s32.totalorder %s11, 0
      %p71 = por %p69, %p70
      %p72 = scmp.ne.s32.totalorder %s61, %s64
      %p73 = scmp.eq.s32.totalorder %s16, 1
      %p74 = por %p72, %p73
      %p75 = scmp.ne.s32.totalorder %s64, %s65
      %p76 = scmp.eq.s32.totalorder %s16, 0
      %p77 = por %p75, %p76
      %p78 = scmp.ne.s32.totalorder %s64, %s65
      %p79 = scmp.eq.s32.totalorder %s17, 1
      %p80 = por %p78, %p79
      %p82 = scmp.ne.s32.totalorder %s65, %s81
      %p83 = scmp.eq.s32.totalorder %s17, 0
      %p84 = por %p82, %p83
      %p85 = scmp.le.s32.totalorder 1, %s11
      %p86 = scmp.lt.s32.totalorder %s11, 3
      %p87 = pnand %p85, %p86
      %p88 = pneg %p87
      // Predicated region
      $region9: #{tpu_custom_call.1} parent=5 // pred_check
        _
      $region10: #{tpu_custom_call.1} parent=5 // pred_check_branch
        %90 = sbr.rel (%p87) target = $region12
      $region11: #{tpu_custom_call.1} parent=5 // pred_region
        %s91 = ssub.s32 %s11, 1
        // Predicated region
        $region13: #{tpu_custom_call.1} parent=11 // pred_check
          %p92 = pneg %p49
        $region14: #{tpu_custom_call.1} parent=11 // pred_check_branch
          %94 = sbr.rel (%p92) target = $region16
        $region15: #{tpu_custom_call.1} parent=11 // pred_region
          %s96 = ssub.s32 128, 128
          %97 = vsyncadd [#allocation3], %s96
          %s98 = smul.addr %s20, 128
          %s99 = scalar_lea.hbm %s0, %s98
          %s101 = sshll.u32 [#allocation2], 4
          %s102 = int_to_ptr.vmem [resolvable:$true] %s101
          %104 = dma.hbm_to_vmem [thread:$0]  %s99, 128, %s102, [#allocation3]
        $region16: #{tpu_custom_call.1} parent=11 // pred_fallthru
          _
      $region12: #{tpu_custom_call.1} parent=5 // pred_fallthru
        _
      %p105 = scmp.lt.s32.totalorder %s11, 2
      // Predicated region
      $region17: #{tpu_custom_call.1} parent=5 // pred_check
        %p106 = pneg %p105
      $region18: #{tpu_custom_call.1} parent=5 // pred_check_branch
        %108 = sbr.rel (%p106) target = $region20
      $region19: #{tpu_custom_call.1} parent=5 // pred_region
        _
      $region20: #{tpu_custom_call.1} parent=5 // pred_fallthru
        _
      %p109 = scmp.le.s32.totalorder 1, %s11
      %p110 = scmp.lt.s32.totalorder %s11, 3
      %p111 = pnand %p109, %p110
      %p112 = pneg %p111
      // Predicated region
      $region21: #{tpu_custom_call.1} parent=5 // pred_check
        _
      $region22: #{tpu_custom_call.1} parent=5 // pred_check_branch
        %114 = sbr.rel (%p111) target = $region24
      $region23: #{tpu_custom_call.1} parent=5 // pred_region
        %s115 = ssub.s32 %s11, 1
        // Predicated region
        $region25: #{tpu_custom_call.1} parent=23 // pred_check
          %p116 = pneg %p49
        $region26: #{tpu_custom_call.1} parent=23 // pred_check_branch
          %118 = sbr.rel (%p116) target = $region28
        $region27: #{tpu_custom_call.1} parent=23 // pred_region
          %119 = dma.done [#allocation3], 128
        $region28: #{tpu_custom_call.1} parent=23 // pred_fallthru
          _
        %p120 = pneg %p49
        %p121 = pneg %p46
        %p122 = pneg %p77
        %p123 = pneg %p74
        %s124 = sand.u32 %s64, 1
        %s125 = scalar_lea.sflag [#allocation4], %s124
        %s126 = sand.u32 %s64, 1
        %s127 = smul.addr %s126, 8
        %s128 = scalar_lea.vmem [#allocation5], %s127
        %v129 = vld [vmem:[#allocation2] sm:$0xff]
        %130 = vst [vmem:[%s128] sm:$0xff] %v129
        %s131 = sand.u32 %s64, 1
        %s132 = scalar_lea.sflag [#allocation4], %s131
        %s133 = sand.u32 %s64, 1
        %s134 = smul.addr %s133, 8
        %s135 = scalar_lea.vmem [#allocation5], %s134
        // Predicated region
        $region29: #{tpu_custom_call.1} parent=23 // pred_check
          %p136 = pneg %p74
        $region30: #{tpu_custom_call.1} parent=23 // pred_check_branch
          %138 = sbr.rel (%p136) target = $region32
        $region31: #{tpu_custom_call.1} parent=23 // pred_region
          %s140 = ssub.s32 128, 128
          %141 = vsyncadd %s132, %s140
          %s142 = sadd.s32 %s20, %s21
          %s143 = smul.addr %s142, 128
          %s144 = scalar_lea.hbm %s1, %s143
          %s146 = sshll.u32 %s135, 4
          %s147 = int_to_ptr.vmem [resolvable:$true] %s146
          %149 = dma.vmem_to_hbm [thread:$0]  %s147, 128, %s144, %s132
        $region32: #{tpu_custom_call.1} parent=23 // pred_fallthru
          _
      $region24: #{tpu_custom_call.1} parent=5 // pred_fallthru
        _
      %p150 = scmp.le.s32.totalorder 2, %s11
      // Predicated region
      $region33: #{tpu_custom_call.1} parent=5 // pred_check
        %p151 = pneg %p150
      $region34: #{tpu_custom_call.1} parent=5 // pred_check_branch
        %153 = sbr.rel (%p151) target = $region36
      $region35: #{tpu_custom_call.1} parent=5 // pred_region
        %s154 = ssub.s32 %s11, 2
        // Predicated region
        $region37: #{tpu_custom_call.1} parent=35 // pred_check
          %p155 = pneg %p80
        $region38: #{tpu_custom_call.1} parent=35 // pred_check_branch
          %157 = sbr.rel (%p155) target = $region40
        $region39: #{tpu_custom_call.1} parent=35 // pred_region
          %s158 = sand.u32 %s65, 1
          %s159 = scalar_lea.sflag [#allocation4], %s158
          %s160 = sand.u32 %s65, 1
          %s161 = smul.addr %s160, 8
          %s162 = scalar_lea.vmem [#allocation5], %s161
          %163 = dma.done %s159, 128
        $region40: #{tpu_custom_call.1} parent=35 // pred_fallthru
          _
      $region36: #{tpu_custom_call.1} parent=5 // pred_fallthru
        _
    $region6: #{tpu_custom_call.1} parent=1 // loop_footer
      %s15 = sadd.s32 1, %s11
    $region7: #{tpu_custom_call.1} parent=1 // loop_footer_branch
      %10 = sbr.rel target = $region3
    $region8: #{tpu_custom_call.1} parent=1 // loop_exit
      _
    %164 = vsyncpa [#allocation3], 1
    %s165 = scalar_lea.sflag [#allocation3], 1
    %166 = vsyncpa %s165, 1
    %167 = vsyncpa [#allocation4], 1
    %s168 = scalar_lea.sflag [#allocation4], 1
    %169 = vsyncpa %s168, 1

</llo_original>
